<compile_context>
chip_gen: v5e
topology: v5e:2x2
jax: 0.10.0
libtpu: 0.0.40
codegen_flags: <defaults>
</compile_context>

<pallas_src>
import functools

import jax
import jax.numpy as jnp
from jax.experimental import pallas as pl
from jax.experimental.pallas import tpu as pltpu


NEG_SLOPE = 0.01  # PyTorch nn.LeakyReLU default negative_slope
LANE = 128        # vreg lane width


def _round_up(v, m):
    return (v + m - 1) // m * m


def _round_down(v, m):
    return (v // m) * m


def _pad_to(a, shape):
    pads = [(0, t - s) for s, t in zip(a.shape, shape)]
    if all(p == (0, 0) for p in pads):
        return a
    return jnp.pad(a, pads)


def _vmem_capacity_bytes():
    """Physical per-core VMEM (128 MiB on v5e/v6e, 64 MiB on v7x)."""
    try:
        info = pltpu.get_tpu_info()
        cap = int(getattr(info, "vmem_capacity_bytes", 0))
        if cap > 0:
            return cap
    except Exception:
        pass
    return 64 * 1024 * 1024  # conservative (v7x-sized) fallback


# ---------------------------------------------------------------------------
# Kernels
# ---------------------------------------------------------------------------

def _mlp_fused_kernel(x_ref, w1_ref, b1_ref, w2_ref, b2_ref, o_ref):
    # Resident-weight path: full W1^T / W2^T live in VMEM for the whole grid.
    # x_ref:  (tile_n, in_p)
    # w1_ref: (in_p, hid_p)   b1_ref: (1, hid_p)
    # w2_ref: (hid_p, out_p)  b2_ref: (1, out_p)
    x = x_ref[...]
    h = jnp.dot(x, w1_ref[...], preferred_element_type=jnp.float32)
    h = h + b1_ref[...]
    # LeakyReLU on the f32 accumulator: one mul + one max on the VPU.
    h = jnp.maximum(h, NEG_SLOPE * h)
    y = jnp.dot(h.astype(w2_ref.dtype), w2_ref[...],
                preferred_element_type=jnp.float32)
    # Dropout (eval mode) == identity.
    o_ref[...] = (y + b2_ref[...]).astype(o_ref.dtype)


def _mlp_hid_tiled_kernel(x_ref, w1_ref, b1_ref, w2_ref, b2_ref, o_ref,
                          acc_ref):
    # Hidden-dim tiled path: grid = (batch tiles, hid tiles); the hid axis is
    # a reduction into an f32 VMEM accumulator. Exact because LeakyReLU is
    # elementwise over each hid slice (with its own b1 slice) and b2 is added
    # once at the end.
    k = pl.program_id(1)

    @pl.when(k == 0)
    def _init():
        acc_ref[...] = jnp.zeros_like(acc_ref)

    h = jnp.dot(x_ref[...], w1_ref[...], preferred_element_type=jnp.float32)
    h = h + b1_ref[...]
    h = jnp.maximum(h, NEG_SLOPE * h)
    acc_ref[...] += jnp.dot(h.astype(w2_ref.dtype), w2_ref[...],
                            preferred_element_type=jnp.float32)

    @pl.when(k == pl.num_programs(1) - 1)
    def _finalize():
        o_ref[...] = (acc_ref[...] + b2_ref[...]).astype(o_ref.dtype)


# ---------------------------------------------------------------------------
# Parameter packing (done once, hoisted out of the forward path)
# ---------------------------------------------------------------------------

def pack_params(w1, b1, w2, b2, *, compute_dtype=None):
    """PyTorch layout -> lane-dense kernel layout. Call once per param set.

    w1: [hid, in], b1: [hid], w2: [out, hid], b2: [out]
    Returns (w1_t [in_p,hid_p], b1_p [1,hid_p] f32, w2_t [hid_p,out_p],
             b2_p [1,out_p] f32). Zero padding is mathematically exact.
    """
    hid_size, in_size = w1.shape
    out_size = w2.shape[0]
    if compute_dtype is not None:
        w1 = w1.astype(compute_dtype)
        w2 = w2.astype(compute_dtype)

    in_p = _round_up(in_size, LANE)
    hid_p = _round_up(hid_size, LANE)
    out_p = _round_up(out_size, LANE)

    w1_t = _pad_to(w1.T, (in_p, hid_p))
    w2_t = _pad_to(w2.T, (hid_p, out_p))
    b1_p = _pad_to(b1.reshape(1, -1).astype(jnp.float32), (1, hid_p))
    b2_p = _pad_to(b2.reshape(1, -1).astype(jnp.float32), (1, out_p))
    return w1_t, b1_p, w2_t, b2_p


# ---------------------------------------------------------------------------
# Forward
# ---------------------------------------------------------------------------

def mlp_forward(x, w1_t, b1_p, w2_t, b2_p, out_size, *,
                compute_dtype=None, tile_n=None, vmem_budget=None):
    """x: [N, in]; packed params from pack_params(); out_size: true out dim."""
    orig_dtype = x.dtype
    n, in_size = x.shape
    if compute_dtype is not None:
        x = x.astype(compute_dtype)

    itemsize = jnp.dtype(x.dtype).itemsize
    out_itemsize = jnp.dtype(orig_dtype).itemsize

    in_p, hid_p = w1_t.shape
    out_p = w2_t.shape[1]
    assert in_size <= in_p, "x feature dim does not match packed params"

    # dtype-aware row granule: 8 rows (f32) / 16 (bf16) / 32 (8-bit) keeps
    # vregs fully packed and output stores unmasked.
    granule = max(8, 32 // itemsize)

    capacity = _vmem_capacity_bytes()
    if vmem_budget is None:
        vmem_budget = (capacity * 3) // 4  # ~96 MiB v5e/v6e, ~48 MiB v7x

    n_g = _round_up(n, granule)

    # Resident (double-buffer-allocated) weight/bias footprint.
    weight_bytes = 2 * ((in_p * hid_p + hid_p * out_p) * itemsize
                        + (hid_p + out_p) * 4)
    # Double-buffered per-row activation traffic (x tile in, out tile out).
    row_bytes = 2 * (in_p * itemsize + out_p * out_itemsize)

    use_hid_tiling = weight_bytes + granule * row_bytes > vmem_budget

    if not use_hid_tiling:
        # ----- resident-weight path: 1-D grid over the batch -----
        if tile_n is None:
            leftover = vmem_budget - weight_bytes
            tile_n = min(1024, _round_down(leftover // row_bytes, granule), n_g)
            tile_n = max(granule, tile_n)
            # Prefer >= 2 grid steps when the batch allows it: overlaps DMA
            # with compute and feeds both v7x TensorCores.
            if n_g > 2 * granule and tile_n >= n_g:
                tile_n = _round_up((n_g + 1) // 2, granule)
        tile_n = max(granule, _round_up(int(tile_n), granule))

        n_p = _round_up(n, tile_n)
        x_p = _pad_to(x, (n_p, in_p))
        grid = (n_p // tile_n,)

        needed = weight_bytes + tile_n * row_bytes
        vmem_limit = int(min(max(needed + (4 << 20), 16 << 20), capacity))

        flops = 2 * n_p * (in_p * hid_p + hid_p * out_p)
        bytes_accessed = (n_p * in_p * itemsize
                          + (in_p * hid_p + hid_p * out_p) * itemsize
                          + (hid_p + out_p) * 4
                          + n_p * out_p * out_itemsize)

        out_arr = pl.pallas_call(
            _mlp_fused_kernel,
            out_shape=jax.ShapeDtypeStruct((n_p, out_p), orig_dtype),
            grid_spec=pltpu.PrefetchScalarGridSpec(
                num_scalar_prefetch=0,
                grid=grid,
                in_specs=[
                    pl.BlockSpec((tile_n, in_p), lambda i: (i, 0)),   # x tile
                    pl.BlockSpec((in_p, hid_p), lambda i: (0, 0)),    # W1^T resident
                    pl.BlockSpec((1, hid_p), lambda i: (0, 0)),       # b1 resident
                    pl.BlockSpec((hid_p, out_p), lambda i: (0, 0)),   # W2^T resident
                    pl.BlockSpec((1, out_p), lambda i: (0, 0)),       # b2 resident
                ],
                out_specs=pl.BlockSpec((tile_n, out_p), lambda i: (i, 0)),
            ),
            compiler_params=pltpu.CompilerParams(
                dimension_semantics=("parallel",),
                vmem_limit_bytes=vmem_limit,
            ),
            cost_estimate=pl.CostEstimate(
                flops=flops, transcendentals=0, bytes_accessed=bytes_accessed),
        )(x_p, w1_t, b1_p, w2_t, b2_p)

    else:
        # ----- large-weight path: tile the hidden dim with an accumulator ---
        if tile_n is None:
            tile_n = min(512, n_g)
        tile_n = max(granule, _round_up(int(tile_n), granule))

        def step_bytes(tn, th):
            return (2 * (tn * in_p * itemsize                 # x tile
                         + in_p * th * itemsize + th * 4      # W1 slice + b1
                         + th * out_p * itemsize              # W2 slice
                         + out_p * 4                          # b2
                         + tn * out_p * out_itemsize)         # out tile
                    + tn * out_p * 4)                         # f32 accumulator

        tile_h = max(LANE, _round_down(hid_p, LANE))
        while tile_h > LANE and step_bytes(tile_n, tile_h) > vmem_budget:
            tile_h = max(LANE, _round_down(tile_h // 2, LANE))
        while tile_n > granule and step_bytes(tile_n, tile_h) > vmem_budget:
            tile_n = max(granule, _round_down(tile_n // 2, granule))

        hid_pt = _round_up(hid_p, tile_h)
        if hid_pt != hid_p:  # extra zero hid columns contribute exactly zero
            w1_t = _pad_to(w1_t, (in_p, hid_pt))
            b1_p = _pad_to(b1_p, (1, hid_pt))
            w2_t = _pad_to(w2_t, (hid_pt, out_p))

        n_p = _round_up(n, tile_n)
        x_p = _pad_to(x, (n_p, in_p))
        grid = (n_p // tile_n, hid_pt // tile_h)

        vmem_limit = int(min(max(step_bytes(tile_n, tile_h) + (4 << 20),
                                 16 << 20), capacity))

        flops = 2 * n_p * (in_p * hid_pt + hid_pt * out_p)
        bytes_accessed = (n_p * in_p * itemsize
                          + (in_p * hid_pt + hid_pt * out_p) * itemsize
                          + (hid_pt + out_p) * 4
                          + n_p * out_p * out_itemsize)

        out_arr = pl.pallas_call(
            _mlp_hid_tiled_kernel,
            out_shape=jax.ShapeDtypeStruct((n_p, out_p), orig_dtype),
            grid_spec=pltpu.PrefetchScalarGridSpec(
                num_scalar_prefetch=0,
                grid=grid,
                in_specs=[
                    pl.BlockSpec((tile_n, in_p), lambda i, k: (i, 0)),
                    pl.BlockSpec((in_p, tile_h), lambda i, k: (0, k)),
                    pl.BlockSpec((1, tile_h), lambda i, k: (0, k)),
                    pl.BlockSpec((tile_h, out_p), lambda i, k: (k, 0)),
                    pl.BlockSpec((1, out_p), lambda i, k: (0, 0)),
                ],
                out_specs=pl.BlockSpec((tile_n, out_p), lambda i, k: (i, 0)),
                scratch_shapes=[pltpu.VMEM((tile_n, out_p), jnp.float32)],
            ),
            compiler_params=pltpu.CompilerParams(
                dimension_semantics=("parallel", "arbitrary"),
                vmem_limit_bytes=vmem_limit,
            ),
            cost_estimate=pl.CostEstimate(
                flops=flops, transcendentals=0, bytes_accessed=bytes_accessed),
        )(x_p, w1_t, b1_p, w2_t, b2_p)

    if out_arr.shape == (n, out_size):
        return out_arr
    return out_arr[:n, :out_size]


# ---------------------------------------------------------------------------
# Reference + test
# ---------------------------------------------------------------------------

def reference_mlp(x, w1, b1, w2, b2):
    h = x @ w1.T + b1.reshape(1, -1)
    h = jnp.where(h > 0, h, NEG_SLOPE * h)
    return h @ w2.T + b2.reshape(1, -1)


def _make_params(key, in_size, hid_size, out_size):
    kw1, kb1, kw2, kb2 = jax.random.split(key, 4)
    bound1 = 1.0 / jnp.sqrt(in_size)
    bound2 = 1.0 / jnp.sqrt(hid_size)
    w1 = jax.random.uniform(kw1, (hid_size, in_size), jnp.float32, -bound1, bound1)
    b1 = jax.random.uniform(kb1, (hid_size,), jnp.float32, -bound1, bound1)
    w2 = jax.random.uniform(kw2, (out_size, hid_size), jnp.float32, -bound2, bound2)
    b2 = jax.random.uniform(kb2, (out_size,), jnp.float32, -bound2, bound2)
    return w1, b1, w2, b2


if __name__ == "__main__":
    key = jax.random.PRNGKey(0)
    k0, k1, k2 = jax.random.split(key, 3)

    # --- MLP(in=32, hid=64, out=16, dropout=0.1), batch=16: resident path ---
    in_size, hid_size, out_size = 32, 64, 16
    batch = 16
    x = jax.random.normal(k0, (batch, in_size), dtype=jnp.float32)
    w1, b1, w2, b2 = _make_params(k1, in_size, hid_size, out_size)
    ref = reference_mlp(x, w1, b1, w2, b2)

    packed = pack_params(w1, b1, w2, b2)                       # pack ONCE
    fwd = jax.jit(functools.partial(mlp_forward, out_size=out_size))
    out = jax.block_until_ready(fwd(x, *packed))
    assert out.shape == (batch, out_size)
    assert jnp.allclose(out, ref, atol=1e-5, rtol=1e-5), "f32 mismatch vs reference"

    # bf16 compute path (bf16 MXU on v6e/v7x), f32 accumulation in-kernel.
    packed_bf16 = pack_params(w1, b1, w2, b2, compute_dtype=jnp.bfloat16)
    fwd_bf16 = jax.jit(functools.partial(mlp_forward, out_size=out_size,
                                         compute_dtype=jnp.bfloat16))
    out_bf16 = jax.block_until_ready(fwd_bf16(x, *packed_bf16))
    assert out_bf16.shape == (batch, out_size)
    assert jnp.allclose(out_bf16, ref, atol=1e-1, rtol=1e-1), "bf16 mismatch vs reference"

    # --- exercise the hidden-dim-tiled fallback (forced tiny VMEM budget) ---
    in2, hid2, out2 = 160, 384, 96
    batch2 = 40
    x2 = jax.random.normal(k2, (batch2, in2), dtype=jnp.float32)
    w1b, b1b, w2b, b2b = _make_params(jax.random.PRNGKey(7), in2, hid2, out2)
    ref2 = reference_mlp(x2, w1b, b1b, w2b, b2b)

    packed2 = pack_params(w1b, b1b, w2b, b2b)
    fwd_tiled = jax.jit(functools.partial(mlp_forward, out_size=out2,
                                          vmem_budget=512 * 1024))
    out2_arr = jax.block_until_ready(fwd_tiled(x2, *packed2))
    assert out2_arr.shape == (batch2, out2)
    assert jnp.allclose(out2_arr, ref2, atol=1e-4, rtol=1e-4), \
        "hid-tiled path mismatch vs reference"

    print("KERNEL_OK")
</pallas_src>

<mosaic_0001>
module attributes {stable_mosaic.version = 11 : i64} {
  func.func @_mlp_fused_kernel(%arg0: i32, %arg1: memref<16x128xf32, #tpu.memory_space<vmem>>, %arg2: memref<128x128xf32, #tpu.memory_space<vmem>>, %arg3: memref<1x128xf32, #tpu.memory_space<vmem>>, %arg4: memref<128x128xf32, #tpu.memory_space<vmem>>, %arg5: memref<1x128xf32, #tpu.memory_space<vmem>>, %arg6: memref<16x128xf32, #tpu.memory_space<vmem>>) attributes {dimension_semantics = [#tpu.dimension_semantics<parallel>], iteration_bounds = array<i64: 1>, scalar_prefetch = 0 : i64, scratch_operands = 0 : i64, tpu.core_type = #tpu.core_type<tc>, window_params = [{transform_indices = @transform_0, window_bounds = array<i64: 16, 128>}, {pipeline_mode = #tpu.pipeline_mode<synchronous>, transform_indices = @transform_1, window_bounds = array<i64: 128, 128>}, {pipeline_mode = #tpu.pipeline_mode<synchronous>, transform_indices = @transform_2, window_bounds = array<i64: 1, 128>}, {pipeline_mode = #tpu.pipeline_mode<synchronous>, transform_indices = @transform_3, window_bounds = array<i64: 128, 128>}, {pipeline_mode = #tpu.pipeline_mode<synchronous>, transform_indices = @transform_4, window_bounds = array<i64: 1, 128>}, {transform_indices = @transform_5, window_bounds = array<i64: 16, 128>}]} {
    %c0 = arith.constant 0 : index
    %c0_0 = arith.constant 0 : index
    %0 = vector.load %arg1[%c0, %c0_0] : memref<16x128xf32, #tpu.memory_space<vmem>>, vector<16x128xf32>
    %c0_1 = arith.constant 0 : index
    %c0_2 = arith.constant 0 : index
    %1 = vector.load %arg2[%c0_1, %c0_2] : memref<128x128xf32, #tpu.memory_space<vmem>>, vector<128x128xf32>
    %cst = arith.constant dense<0.000000e+00> : vector<16x128xf32>
    %2 = tpu.matmul %0, %1, %cst {dimension_numbers = #tpu.dot_dimension_numbers<[1], [0], [0], [1], [0, 0, 1, 1], [], []>} : vector<16x128xf32>, vector<128x128xf32>, vector<16x128xf32> -> vector<16x128xf32>
    %c0_3 = arith.constant 0 : index
    %c0_4 = arith.constant 0 : index
    %3 = vector.load %arg3[%c0_3, %c0_4] : memref<1x128xf32, #tpu.memory_space<vmem>>, vector<1x128xf32>
    %4 = vector.broadcast %3 : vector<1x128xf32> to vector<16x128xf32>
    %5 = arith.addf %2, %4 : vector<16x128xf32>
    %cst_5 = arith.constant 0.00999999977 : f32
    %6 = vector.broadcast %cst_5 : f32 to vector<16x128xf32>
    %7 = arith.mulf %6, %5 : vector<16x128xf32>
    %8 = arith.maximumf %5, %7 : vector<16x128xf32>
    %c0_6 = arith.constant 0 : index
    %c0_7 = arith.constant 0 : index
    %9 = vector.load %arg4[%c0_6, %c0_7] : memref<128x128xf32, #tpu.memory_space<vmem>>, vector<128x128xf32>
    %cst_8 = arith.constant dense<0.000000e+00> : vector<16x128xf32>
    %10 = tpu.matmul %8, %9, %cst_8 {dimension_numbers = #tpu.dot_dimension_numbers<[1], [0], [0], [1], [0, 0, 1, 1], [], []>} : vector<16x128xf32>, vector<128x128xf32>, vector<16x128xf32> -> vector<16x128xf32>
    %c0_9 = arith.constant 0 : index
    %c0_10 = arith.constant 0 : index
    %11 = vector.load %arg5[%c0_9, %c0_10] : memref<1x128xf32, #tpu.memory_space<vmem>>, vector<1x128xf32>
    %12 = vector.broadcast %11 : vector<1x128xf32> to vector<16x128xf32>
    %13 = arith.addf %10, %12 : vector<16x128xf32>
    %c0_11 = arith.constant 0 : index
    %c0_12 = arith.constant 0 : index
    %14 = vector.load %arg6[%c0_11, %c0_12] : memref<16x128xf32, #tpu.memory_space<vmem>>, vector<16x128xf32>
    tpu.vector_store %arg6[%c0_11, %c0_12], %13 {strides = array<i32>} : memref<16x128xf32, #tpu.memory_space<vmem>>, vector<16x128xf32>,
    return
  }
  func.func @transform_0(%arg0: i32) -> (i32, i32) {
    %c0_i32 = arith.constant 0 : i32
    %c0_i32_0 = arith.constant 0 : i32
    return %arg0, %c0_i32 : i32, i32
  }
  func.func @transform_1(%arg0: i32) -> (i32, i32) {
    %c0_i32 = arith.constant 0 : i32
    %c0_i32_0 = arith.constant 0 : i32
    %c0_i32_1 = arith.constant 0 : i32
    return %c0_i32, %c0_i32_0 : i32, i32
  }
  func.func @transform_2(%arg0: i32) -> (i32, i32) {
    %c0_i32 = arith.constant 0 : i32
    %c0_i32_0 = arith.constant 0 : i32
    %c0_i32_1 = arith.constant 0 : i32
    return %c0_i32, %c0_i32_0 : i32, i32
  }
  func.func @transform_3(%arg0: i32) -> (i32, i32) {
    %c0_i32 = arith.constant 0 : i32
    %c0_i32_0 = arith.constant 0 : i32
    %c0_i32_1 = arith.constant 0 : i32
    return %c0_i32, %c0_i32_0 : i32, i32
  }
  func.func @transform_4(%arg0: i32) -> (i32, i32) {
    %c0_i32 = arith.constant 0 : i32
    %c0_i32_0 = arith.constant 0 : i32
    %c0_i32_1 = arith.constant 0 : i32
    return %c0_i32, %c0_i32_0 : i32, i32
  }
  func.func @transform_5(%arg0: i32) -> (i32, i32) {
    %c0_i32 = arith.constant 0 : i32
    %c0_i32_0 = arith.constant 0 : i32
    return %arg0, %c0_i32 : i32, i32
  }
}

</mosaic_0001>

<llo_original>
// kernel: mlp_forward.1
$region0: #{mlp_forward.1}
  #allocation0 [shape = 'u32[]', space=smem, size = 0x4, offset = 0x4, fixed_abs, tag = 'smem constant byte address 0x4 - core index']
  #allocation1 [shape = 'u32[72,128]{1,0:T(1,128)}', space=vmem, size = 0x9000, scoped, tag = 'internal scratch']
  %s0 = inlined_call_operand.vmem [shape: f32[16,128], index: 0, kind: input, shape index: {}]
  %s1 = inlined_call_operand.hbm [shape: f32[128,128], index: 1, kind: input, shape index: {}]
  %s2 = inlined_call_operand.vmem [shape: f32[1,128], index: 2, kind: input, shape index: {}]
  %s3 = inlined_call_operand.hbm [shape: f32[128,128], index: 3, kind: input, shape index: {}]
  %s4 = inlined_call_operand.vmem [shape: f32[1,128], index: 4, kind: input, shape index: {}]
  %s5 = inlined_call_operand.hbm [shape: f32[16,128], index: 5, kind: output, shape index: {}]
  %s6 = sld [smem:[#allocation0]]
  $region38: #{mlp_forward.1} parent=0
    _
  %s8 = ssub.s32 1, %s6
  %s9 = scalar_select 0, %s8, %s6
  $region1: #{mlp_forward.1} parent=0
    #allocation2 [shape = 'u8[65536]{0}', space=vmem, size = 0x10000, scoped, tag = 'input window, operand 1, single buffered']
    #allocation3 [shape = 's32[1]{0}', space=sflag, size = 0x4, scoped, tag = 'scoped memory for mlp_forward.1']
    #allocation4 [shape = 's32[1]{0}', space=sflag, size = 0x4, scoped, tag = 'scoped memory for mlp_forward.1']
    #allocation5 [shape = 'u8[65536]{0}', space=vmem, size = 0x10000, scoped, tag = 'input window, operand 3, single buffered']
    #allocation6 [shape = 's32[1]{0}', space=sflag, size = 0x4, scoped, tag = 'scoped memory for mlp_forward.1']
    #allocation7 [shape = 'u8[8192]{0}', space=vmem, size = 0x2000, scoped, tag = 'output window, operand 0, single buffered']
    %10 = vsyncpa [#allocation3], 0
    %11 = vsyncpa [#allocation6], 0
    %12 = vsyncpa [#allocation4], 0
    // Predicated region
    $region2: #{mlp_forward.1} parent=1 // pred_check
      _
    $region3: #{mlp_forward.1} parent=1 // pred_check_branch
      %14 = sbr.rel (0) target = $region5
    $region4: #{mlp_forward.1} parent=1 // pred_region
      _
    $region5: #{mlp_forward.1} parent=1 // pred_fallthru
      _
    // Predicated region
    $region6: #{mlp_forward.1} parent=1 // pred_check
      _
    $region7: #{mlp_forward.1} parent=1 // pred_check_branch
      %16 = sbr.rel (0) target = $region9
    $region8: #{mlp_forward.1} parent=1 // pred_region
      %18 = vsyncadd [#allocation3], 0
      %s19 = sshll.u32 %s1, 4
      %s20 = int_to_ptr.hbm [resolvable:$true] %s19
      %s21 = sshll.u32 [#allocation2], 4
      %s22 = int_to_ptr.vmem [resolvable:$true] %s21
      %27 = dma.hbm_to_vmem [thread:$0]  %s20, 2048, %s22, [#allocation3], 128, 128, 8
    $region9: #{mlp_forward.1} parent=1 // pred_fallthru
      _
    // Predicated region
    $region10: #{mlp_forward.1} parent=1 // pred_check
      _
    $region11: #{mlp_forward.1} parent=1 // pred_check_branch
      %29 = sbr.rel (0) target = $region13
    $region12: #{mlp_forward.1} parent=1 // pred_region
      _
    $region13: #{mlp_forward.1} parent=1 // pred_fallthru
      _
    // Predicated region
    $region14: #{mlp_forward.1} parent=1 // pred_check
      _
    $region15: #{mlp_forward.1} parent=1 // pred_check_branch
      %31 = sbr.rel (0) target = $region17
    $region16: #{mlp_forward.1} parent=1 // pred_region
      %33 = vsyncadd [#allocation6], 0
      %s34 = sshll.u32 %s3, 4
      %s35 = int_to_ptr.hbm [resolvable:$true] %s34
      %s36 = sshll.u32 [#allocation5], 4
      %s37 = int_to_ptr.vmem [resolvable:$true] %s36
      %42 = dma.hbm_to_vmem [thread:$0]  %s35, 2048, %s37, [#allocation6], 128, 128, 8
    $region17: #{mlp_forward.1} parent=1 // pred_fallthru
      _
    // Predicated region
    $region18: #{mlp_forward.1} parent=1 // pred_check
      _
    $region19: #{mlp_forward.1} parent=1 // pred_check_branch
      %44 = sbr.rel (0) target = $region21
    $region20: #{mlp_forward.1} parent=1 // pred_region
      _
    $region21: #{mlp_forward.1} parent=1 // pred_fallthru
      _
    // Predicated region
    $region22: #{mlp_forward.1} parent=1 // pred_check
      _
    $region23: #{mlp_forward.1} parent=1 // pred_check_branch
      %46 = sbr.rel (0) target = $region25
    $region24: #{mlp_forward.1} parent=1 // pred_region
      %48 = dma.done [#allocation3], 2048
    $region25: #{mlp_forward.1} parent=1 // pred_fallthru
      _
    // Predicated region
    $region26: #{mlp_forward.1} parent=1 // pred_check
      _
    $region27: #{mlp_forward.1} parent=1 // pred_check_branch
      %50 = sbr.rel (0) target = $region29
    $region28: #{mlp_forward.1} parent=1 // pred_region
      %52 = dma.done [#allocation6], 2048
    $region29: #{mlp_forward.1} parent=1 // pred_fallthru
      _
    %v53 = vld [vmem:[%s0] sm:$0xff]
    %v54 = vld [vmem:[%s0 + $0x8] sm:$0xff]
    %v55 = vld [vmem:[#allocation2] sm:$0xff]
    %v56 = vld [vmem:[#allocation2 + $0x8] sm:$0xff]
    %v57 = vld [vmem:[#allocation2 + $0x10] sm:$0xff]
    %v58 = vld [vmem:[#allocation2 + $0x18] sm:$0xff]
    %v59 = vld [vmem:[#allocation2 + $0x20] sm:$0xff]
    %v60 = vld [vmem:[#allocation2 + $0x28] sm:$0xff]
    %v61 = vld [vmem:[#allocation2 + $0x30] sm:$0xff]
    %v62 = vld [vmem:[#allocation2 + $0x38] sm:$0xff]
    %v63 = vld [vmem:[#allocation2 + $0x40] sm:$0xff]
    %v64 = vld [vmem:[#allocation2 + $0x48] sm:$0xff]
    %v65 = vld [vmem:[#allocation2 + $0x50] sm:$0xff]
    %v66 = vld [vmem:[#allocation2 + $0x58] sm:$0xff]
    %v67 = vld [vmem:[#allocation2 + $0x60] sm:$0xff]
    %v68 = vld [vmem:[#allocation2 + $0x68] sm:$0xff]
    %v69 = vld [vmem:[#allocation2 + $0x70] sm:$0xff]
    %v70 = vld [vmem:[#allocation2 + $0x78] sm:$0xff]
    %v71 = vld [vmem:[%s2] sm:$0x1]
    %v73 = vperm.slane %v71, 0
    %75 = vmatpush.msra.mxu0 %v70
    %76 = vmatpush.msra.mxu0 %v69
    %77 = vmatpush.msra.mxu0 %v68
    %78 = vmatpush.msra.mxu0 %v67
    %79 = vmatpush.msra.mxu0 %v66
    %80 = vmatpush.msra.mxu0 %v65
    %81 = vmatpush.msra.mxu0 %v64
    %82 = vmatpush.msra.mxu0 %v63
    %83 = vmatpush.msra.mxu0 %v62
    %84 = vmatpush.msra.mxu0 %v61
    %85 = vmatpush.msra.mxu0 %v60
    %86 = vmatpush.msra.mxu0 %v59
    %87 = vmatpush.msra.mxu0 %v58
    %88 = vmatpush.msra.mxu0 %v57
    %89 = vmatpush.msra.mxu0 %v56
    %90 = vmatpush.msra.mxu0 %v55
    %91 = vmatmul.f32.gmra.mxu0 %v53
    %v92 = vpop.f32.mrf.mxu0
    %v93 = vadd.f32 %v73, %v92
    %94 = vmatmul.f32.gmra.mxu0 %v54
    %v95 = vpop.f32.mrf.mxu0
    %v96 = vadd.f32 %v73, %v95
    %97 = vdwg.mxu0
    %v98 = vmul.f32 %v93, 0.01
    %v99 = vmul.f32 %v96, 0.01
    %v100 = vmax.f32 %v93, %v98
    %v101 = vmax.f32 %v96, %v99
    %v102 = vld [vmem:[#allocation5] sm:$0xff]
    %v103 = vld [vmem:[#allocation5 + $0x8] sm:$0xff]
    %v104 = vld [vmem:[#allocation5 + $0x10] sm:$0xff]
    %v105 = vld [vmem:[#allocation5 + $0x18] sm:$0xff]
    %v106 = vld [vmem:[#allocation5 + $0x20] sm:$0xff]
    %v107 = vld [vmem:[#allocation5 + $0x28] sm:$0xff]
    %v108 = vld [vmem:[#allocation5 + $0x30] sm:$0xff]
    %v109 = vld [vmem:[#allocation5 + $0x38] sm:$0xff]
    %v110 = vld [vmem:[#allocation5 + $0x40] sm:$0xff]
    %v111 = vld [vmem:[#allocation5 + $0x48] sm:$0xff]
    %v112 = vld [vmem:[#allocation5 + $0x50] sm:$0xff]
    %v113 = vld [vmem:[#allocation5 + $0x58] sm:$0xff]
    %v114 = vld [vmem:[#allocation5 + $0x60] sm:$0xff]
    %v115 = vld [vmem:[#allocation5 + $0x68] sm:$0xff]
    %v116 = vld [vmem:[#allocation5 + $0x70] sm:$0xff]
    %v117 = vld [vmem:[#allocation5 + $0x78] sm:$0xff]
    %v118 = vld [vmem:[%s4] sm:$0x1]
    %v120 = vperm.slane %v118, 0
    %122 = vmatpush.msra.mxu0 %v117
    %123 = vmatpush.msra.mxu0 %v116
    %124 = vmatpush.msra.mxu0 %v115
    %125 = vmatpush.msra.mxu0 %v114
    %126 = vmatpush.msra.mxu0 %v113
    %127 = vmatpush.msra.mxu0 %v112
    %128 = vmatpush.msra.mxu0 %v111
    %129 = vmatpush.msra.mxu0 %v110
    %130 = vmatpush.msra.mxu0 %v109
    %131 = vmatpush.msra.mxu0 %v108
    %132 = vmatpush.msra.mxu0 %v107
    %133 = vmatpush.msra.mxu0 %v106
    %134 = vmatpush.msra.mxu0 %v105
    %135 = vmatpush.msra.mxu0 %v104
    %136 = vmatpush.msra.mxu0 %v103
    %137 = vmatpush.msra.mxu0 %v102
    %138 = vmatmul.f32.gmra.mxu0 %v100
    %v139 = vpop.f32.mrf.mxu0
    %v140 = vadd.f32 %v120, %v139
    %141 = vmatmul.f32.gmra.mxu0 %v101
    %v142 = vpop.f32.mrf.mxu0
    %v143 = vadd.f32 %v120, %v142
    %144 = vdwg.mxu0
    %145 = vst [vmem:[#allocation7] sm:$0xff] %v140
    %146 = vst [vmem:[#allocation7 + $0x8] sm:$0xff] %v143
    // Predicated region
    $region30: #{mlp_forward.1} parent=1 // pred_check
      _
    $region31: #{mlp_forward.1} parent=1 // pred_check_branch
      %148 = sbr.rel (0) target = $region33
    $region32: #{mlp_forward.1} parent=1 // pred_region
      %150 = vsyncadd [#allocation4], 0
      %s151 = sshll.u32 [#allocation7], 4
      %s152 = int_to_ptr.vmem [resolvable:$true] %s151
      %s153 = sshll.u32 %s5, 4
      %s154 = int_to_ptr.hbm [resolvable:$true] %s153
      %159 = dma.vmem_to_hbm [thread:$0]  %s152, 256, %s154, [#allocation4], 128, 128, 8
    $region33: #{mlp_forward.1} parent=1 // pred_fallthru
      _
    // Predicated region
    $region34: #{mlp_forward.1} parent=1 // pred_check
      _
    $region35: #{mlp_forward.1} parent=1 // pred_check_branch
      %161 = sbr.rel (0) target = $region37
    $region36: #{mlp_forward.1} parent=1 // pred_region
      %163 = dma.done [#allocation4], 256
    $region37: #{mlp_forward.1} parent=1 // pred_fallthru
      _
    %164 = vsyncpa [#allocation3], 1
    %165 = vsyncpa [#allocation6], 1
    %166 = vsyncpa [#allocation4], 1

</llo_original>
